<compile_context>
chip_gen: v6e
topology: v6e:2x2x1
jax: 0.10.0
libtpu: 0.0.40
codegen_flags: <defaults>
</compile_context>

<pallas_src>
import functools

import numpy as np
import jax
import jax.numpy as jnp
from jax.experimental import pallas as pl
from jax.experimental.pallas import tpu as pltpu


def _round_up(x, m):
    return ((x + m - 1) // m) * m


# ---------------------------------------------------------------------------
# Tiled matmul with fused scale/shift [+ residual] [+ ReLU] epilogue
# ---------------------------------------------------------------------------

def _mm_epilogue_kernel(a_ref, b_ref, ss_ref, o_ref, acc_ref, *, relu):
    @pl.when(pl.program_id(2) == 0)
    def _():
        acc_ref[...] = jnp.zeros_like(acc_ref)

    acc_ref[...] += jnp.dot(a_ref[...], b_ref[...], preferred_element_type=jnp.float32)

    @pl.when(pl.program_id(2) == pl.num_programs(2) - 1)
    def _():
        out = acc_ref[...] * ss_ref[0:1, :] + ss_ref[1:2, :]
        if relu:
            out = jnp.maximum(out, 0.0)
        o_ref[...] = out.astype(o_ref.dtype)


def _mm_epilogue_res_kernel(a_ref, b_ref, ss_ref, res_ref, o_ref, acc_ref, *, relu):
    @pl.when(pl.program_id(2) == 0)
    def _():
        acc_ref[...] = jnp.zeros_like(acc_ref)

    acc_ref[...] += jnp.dot(a_ref[...], b_ref[...], preferred_element_type=jnp.float32)

    @pl.when(pl.program_id(2) == pl.num_programs(2) - 1)
    def _():
        out = (acc_ref[...] * ss_ref[0:1, :] + ss_ref[1:2, :]
               + res_ref[...].astype(jnp.float32))
        if relu:
            out = jnp.maximum(out, 0.0)
        o_ref[...] = out.astype(o_ref.dtype)


def _pick_tiles(M, K, N):
    # tm capped at 128 so M usually splits into >=2 parallel blocks (v7x megacore).
    tm = min(128, _round_up(M, 16))
    tn = min(256, _round_up(N, 128))
    Kp = _round_up(K, 128)
    if Kp <= 1024:
        tk = Kp                      # single K step, no accumulation loop
    else:
        tk = 128
        for cand in (512, 448, 384, 320, 256, 192, 128):
            if Kp % cand == 0:
                tk = cand
                break
    return tm, tn, tk, Kp


def matmul_scale_shift(a, b, scale, shift, relu=False, residual=None,
                       out_dtype=jnp.float32):
    """a: (M, K), b: (K, N), scale/shift: (N,), residual: optional (M, N).

    out = (a @ b) * scale + shift [+ residual] [relu]. MXU operands are bf16;
    accumulation and epilogue math are f32. Inputs are zero-padded to tiles.
    """
    M, K = a.shape
    K2, N = b.shape
    assert K == K2
    tm, tn, tk, Kp = _pick_tiles(M, K, N)
    Mp = _round_up(M, tm)
    Np = _round_up(N, tn)

    a_p = jnp.pad(a.astype(jnp.bfloat16), ((0, Mp - M), (0, Kp - K)))
    b_p = jnp.pad(b.astype(jnp.bfloat16), ((0, Kp - K), (0, Np - N)))
    ss = jnp.stack([jnp.pad(scale.astype(jnp.float32), (0, Np - N)),
                    jnp.pad(shift.astype(jnp.float32), (0, Np - N))])    # (2, Np)

    grid = (Mp // tm, Np // tn, Kp // tk)
    in_specs = [
        pl.BlockSpec((tm, tk), lambda i, j, k: (i, k)),
        pl.BlockSpec((tk, tn), lambda i, j, k: (k, j)),
        pl.BlockSpec((2, tn), lambda i, j, k: (0, j)),
    ]
    inputs = [a_p, b_p, ss]
    if residual is not None:
        res_p = jnp.pad(residual.astype(jnp.bfloat16), ((0, Mp - M), (0, Np - N)))
        in_specs.append(pl.BlockSpec((tm, tn), lambda i, j, k: (i, j)))
        inputs.append(res_p)
        kernel = functools.partial(_mm_epilogue_res_kernel, relu=relu)
    else:
        kernel = functools.partial(_mm_epilogue_kernel, relu=relu)

    out = pl.pallas_call(
        kernel,
        out_shape=jax.ShapeDtypeStruct((Mp, Np), out_dtype),
        grid=grid,
        in_specs=in_specs,
        out_specs=pl.BlockSpec((tm, tn), lambda i, j, k: (i, j)),
        scratch_shapes=[pltpu.VMEM((tm, tn), jnp.float32)],
        compiler_params=pltpu.CompilerParams(
            dimension_semantics=("parallel", "parallel", "arbitrary")),
    )(*inputs)
    return out[:M, :N]


# ---------------------------------------------------------------------------
# Fused multi-layer LSTM + end_fc (single pallas_call)
# ---------------------------------------------------------------------------

def _lstm_stack_kernel(*args, num_layers, T, Bp, H):
    x_ref = args[0]                                  # (T*Bp, Fp) bf16
    w_refs = args[1:1 + 3 * num_layers]              # per layer: W_ih^T, W_hh^T, bias
    wout_ref = args[1 + 3 * num_layers]              # (H, Op) bf16
    bout_ref = args[2 + 3 * num_layers]              # (1, Op) f32
    out_ref = args[3 + 3 * num_layers]               # (T*Bp, Op) f32
    gx_ref = args[4 + 3 * num_layers]                # (T*Bp, 4H) f32 scratch
    hseq_ref = args[5 + 3 * num_layers]              # (T*Bp, H) f32 scratch
    hc_refs = args[6 + 3 * num_layers:]              # per layer: h (Bp,H), c (Bp,H)

    for sc in hc_refs:
        sc[...] = jnp.zeros_like(sc)

    for l in range(num_layers):
        wih_ref, whh_ref, b_ref = w_refs[3 * l], w_refs[3 * l + 1], w_refs[3 * l + 2]
        h_sc, c_sc = hc_refs[2 * l], hc_refs[2 * l + 1]

        if l == 0:
            xin = x_ref[...]
        else:
            xin = hseq_ref[...].astype(jnp.bfloat16)
        # Hoisted input projection: one big MXU matmul per layer (not per timestep).
        gx_ref[...] = jnp.dot(xin, wih_ref[...], preferred_element_type=jnp.float32)

        whh = whh_ref[...]
        bias = b_ref[...]

        def step(t, carry):
            row = pl.multiple_of(t * Bp, 8)
            gates = (gx_ref[pl.ds(row, Bp), :]
                     + jnp.dot(h_sc[...].astype(jnp.bfloat16), whh,
                               preferred_element_type=jnp.float32)
                     + bias)
            # PyTorch gate order i, f, g, o (i/f/o sigmoid, g tanh).
            # Single EUP pass: sigmoid(x) = 0.5 + 0.5*tanh(x/2).
            lane = jax.lax.broadcasted_iota(jnp.int32, gates.shape, 1)
            is_g = jnp.logical_and(lane >= 2 * H, lane < 3 * H)
            y = jnp.tanh(gates * jnp.where(is_g, 1.0, 0.5))
            act = jnp.where(is_g, y, 0.5 * y + 0.5)
            i_g = act[:, 0:H]
            f_g = act[:, H:2 * H]
            g_g = act[:, 2 * H:3 * H]
            o_g = act[:, 3 * H:4 * H]
            c_new = f_g * c_sc[...] + i_g * g_g
            h_new = o_g * jnp.tanh(c_new)
            h_sc[...] = h_new
            c_sc[...] = c_new
            hseq_ref[pl.ds(row, Bp), :] = h_new
            return carry

        jax.lax.fori_loop(0, T, step, 0, unroll=True)

    # Fused end_fc on the VMEM-resident hidden sequence.
    out_ref[...] = (jnp.dot(hseq_ref[...].astype(jnp.bfloat16), wout_ref[...],
                            preferred_element_type=jnp.float32) + bout_ref[...])


def lstm_stack_fused(x_tbf, layer_params, w_out, b_out):
    """x_tbf: (T, B, F) f32 -> (B, T, output_size) f32, end_fc fused in-kernel."""
    T, B, F = x_tbf.shape
    num_layers = len(layer_params)
    H = layer_params[0]["W_hh"].shape[1]
    O = w_out.shape[0]

    Bp = _round_up(max(B, 1), 8)          # sublane-aligned batch
    Fp = _round_up(F, 128)                # lane-dense input features
    Op = _round_up(O, 128)                # lane-dense output

    x = jnp.pad(x_tbf, ((0, 0), (0, Bp - B), (0, Fp - F)))
    x = x.astype(jnp.bfloat16).reshape(T * Bp, Fp)

    inputs = [x]
    in_specs = [pl.BlockSpec((T * Bp, Fp), lambda i: (0, 0))]
    scratch = [pltpu.VMEM((T * Bp, 4 * H), jnp.float32),
               pltpu.VMEM((T * Bp, H), jnp.float32)]
    for l, lp in enumerate(layer_params):
        in_f = lp["W_ih"].shape[1]
        in_fp = Fp if l == 0 else in_f
        wih = jnp.zeros((in_fp, 4 * H), jnp.bfloat16)
        wih = wih.at[:in_f, :].set(lp["W_ih"].T.astype(jnp.bfloat16))
        whh = lp["W_hh"].T.astype(jnp.bfloat16)
        bias = (lp["b_ih"] + lp["b_hh"]).reshape(1, 4 * H).astype(jnp.float32)
        inputs += [wih, whh, bias]
        in_specs += [pl.BlockSpec(wih.shape, lambda i: (0, 0)),
                     pl.BlockSpec(whh.shape, lambda i: (0, 0)),
                     pl.BlockSpec(bias.shape, lambda i: (0, 0))]
        scratch += [pltpu.VMEM((Bp, H), jnp.float32), pltpu.VMEM((Bp, H), jnp.float32)]

    wout = jnp.zeros((H, Op), jnp.bfloat16).at[:, :O].set(w_out.T.astype(jnp.bfloat16))
    bout = jnp.zeros((1, Op), jnp.float32).at[0, :O].set(b_out.astype(jnp.float32))
    inputs += [wout, bout]
    in_specs += [pl.BlockSpec(wout.shape, lambda i: (0, 0)),
                 pl.BlockSpec(bout.shape, lambda i: (0, 0))]

    out = pl.pallas_call(
        functools.partial(_lstm_stack_kernel, num_layers=num_layers, T=T, Bp=Bp, H=H),
        out_shape=jax.ShapeDtypeStruct((T * Bp, Op), jnp.float32),
        grid=(1,),
        in_specs=in_specs,
        out_specs=pl.BlockSpec((T * Bp, Op), lambda i: (0, 0)),
        scratch_shapes=scratch,
        compiler_params=pltpu.CompilerParams(dimension_semantics=("arbitrary",)),
    )(*inputs)

    out = out.reshape(T, Bp, Op)[:, :B, :O]       # (T, B, O)
    return jnp.transpose(out, (1, 0, 2))          # (B, T, O)


# ---------------------------------------------------------------------------
# JAX glue: im2col (NHWC, bf16), pooling, ResNet18 structure
# ---------------------------------------------------------------------------

def im2col_nhwc(x, K, stride, pad):
    """x: (N, H, W, C) -> rows (N*Hout*Wout, K*K*C); ordering matches a
    (Cout, K, K, Cin)-flattened weight (PyTorch weight transposed to NHWC)."""
    N, H, W, C = x.shape
    xp = jnp.pad(x, ((0, 0), (pad, pad), (pad, pad), (0, 0)))
    Hout = (H + 2 * pad - K) // stride + 1
    Wout = (W + 2 * pad - K) // stride + 1
    cols = []
    for i in range(K):
        for j in range(K):
            cols.append(xp[:, i:i + stride * Hout:stride, j:j + stride * Wout:stride, :])
    patches = jnp.stack(cols, axis=3)                        # (N, Hout, Wout, K*K, C)
    patches = patches.reshape(N * Hout * Wout, K * K * C)
    return patches, Hout, Wout


def conv_bn(x_nhwc, weight, bn, stride, pad, relu, residual=None,
            out_dtype=jnp.bfloat16):
    """Conv2d (no bias) + BatchNorm (eval) [+ residual] [+ ReLU], fused into the
    tiled Pallas matmul epilogue. Input/output NHWC; weight is (Cout, Cin, K, K)."""
    eps = 1e-5
    scale = bn["gamma"] / jnp.sqrt(bn["var"] + eps)
    shift = bn["beta"] - bn["mean"] * scale
    cout = weight.shape[0]
    K = weight.shape[-1]
    patches, Hout, Wout = im2col_nhwc(x_nhwc.astype(jnp.bfloat16), K, stride, pad)
    w_mat = jnp.transpose(weight, (0, 2, 3, 1)).reshape(cout, -1).T   # (K*K*Cin, Cout)
    res_rows = None if residual is None else residual.reshape(-1, cout)
    out = matmul_scale_shift(patches, w_mat, scale, shift, relu=relu,
                             residual=res_rows, out_dtype=out_dtype)
    N = x_nhwc.shape[0]
    return out.reshape(N, Hout, Wout, cout)                   # NHWC


def maxpool3x3_s2_p1(x):
    """NHWC max pool 3x3 stride 2 pad 1."""
    N, H, W, C = x.shape
    xp = jnp.pad(x, ((0, 0), (1, 1), (1, 1), (0, 0)), constant_values=-jnp.inf)
    Hout = (H + 2 - 3) // 2 + 1
    Wout = (W + 2 - 3) // 2 + 1
    out = None
    for i in range(3):
        for j in range(3):
            patch = xp[:, i:i + 2 * Hout:2, j:j + 2 * Wout:2, :]
            out = patch if out is None else jnp.maximum(out, patch)
    return out


def basic_block(x, p):
    stride = p["stride"]
    out = conv_bn(x, p["conv1"], p["bn1"], stride=stride, pad=1, relu=True)
    if "down_conv" in p:
        identity = conv_bn(x, p["down_conv"], p["down_bn"], stride=stride, pad=0,
                           relu=False)
    else:
        identity = x
    # conv2 + BN + residual add + ReLU fused into one matmul epilogue.
    return conv_bn(out, p["conv2"], p["bn2"], stride=1, pad=1, relu=True,
                   residual=identity)


def encoder_forward(params, x_nchw):
    """ResNet18 with fc replaced by Linear(512, input_size). Internally NHWC/bf16."""
    x = jnp.transpose(x_nchw, (0, 2, 3, 1)).astype(jnp.bfloat16)  # single relayout
    out = conv_bn(x, params["conv1"], params["bn1"], stride=2, pad=3, relu=True)
    out = maxpool3x3_s2_p1(out)
    for blocks in params["layers"]:
        for blk in blocks:
            out = basic_block(out, blk)
    out = jnp.mean(out.astype(jnp.float32), axis=(1, 2))          # (N, 512)
    W, b = params["fc_w"], params["fc_b"]
    ones = jnp.ones((W.shape[0],), jnp.float32)
    return matmul_scale_shift(out, W.T, ones, b, relu=False, out_dtype=jnp.float32)


def lstm_model_forward(params, batch):
    """batch: (B, T, input_size) batch_first -> (B, T, output_size)."""
    x = jnp.transpose(batch, (1, 0, 2))                            # (T, B, F)
    return lstm_stack_fused(x, params["lstm"], params["end_fc_w"], params["end_fc_b"])


def model_forward(params, x, seq_sizes=None):
    z = encoder_forward(params, x)                                 # (N, input_size)
    if seq_sizes is None:
        batch = z[None, :, :]                                      # (1, N, input_size)
    else:
        # Matches the PyTorch module: zero-padded batch fed straight to the LSTM.
        max_len = max(seq_sizes)
        rows, off = [], 0
        for s in seq_sizes:
            seg = z[off:off + s]
            rows.append(jnp.pad(seg, ((0, max_len - s), (0, 0))))
            off += s
        batch = jnp.stack(rows)                                    # (B, max_len, F)
    return lstm_model_forward(params, batch)


# ---------------------------------------------------------------------------
# Deterministic parameter initialization (shapes match the PyTorch module)
# ---------------------------------------------------------------------------

def make_params(key, input_size, output_size, hidden_size, num_layers):
    keys = iter(jax.random.split(key, 64))

    def conv_w(cout, cin, k):
        fan_in = cin * k * k
        return jax.random.normal(next(keys), (cout, cin, k, k), jnp.float32) * np.sqrt(2.0 / fan_in)

    def bn_p(c):
        return {
            "gamma": jnp.ones((c,), jnp.float32),
            "beta": jnp.zeros((c,), jnp.float32),
            "mean": jnp.zeros((c,), jnp.float32),
            "var": jnp.ones((c,), jnp.float32),
        }

    params = {"conv1": conv_w(64, 3, 7), "bn1": bn_p(64)}

    layers, cin = [], 64
    for cout, nblocks, stride in [(64, 2, 1), (128, 2, 2), (256, 2, 2), (512, 2, 2)]:
        blocks = []
        for b in range(nblocks):
            s = stride if b == 0 else 1
            p = {
                "conv1": conv_w(cout, cin, 3), "bn1": bn_p(cout),
                "conv2": conv_w(cout, cout, 3), "bn2": bn_p(cout),
                "stride": s,
            }
            if s != 1 or cin != cout:
                p["down_conv"] = conv_w(cout, cin, 1)
                p["down_bn"] = bn_p(cout)
            blocks.append(p)
            cin = cout
        layers.append(blocks)
    params["layers"] = layers

    params["fc_w"] = jax.random.normal(next(keys), (input_size, 512), jnp.float32) * np.sqrt(1.0 / 512)
    params["fc_b"] = jnp.zeros((input_size,), jnp.float32)

    k = 1.0 / np.sqrt(hidden_size)
    lstm = []
    for l in range(num_layers):
        in_f = input_size if l == 0 else hidden_size
        lstm.append({
            "W_ih": jax.random.normal(next(keys), (4 * hidden_size, in_f), jnp.float32) * k,
            "W_hh": jax.random.normal(next(keys), (4 * hidden_size, hidden_size), jnp.float32) * k,
            "b_ih": jax.random.normal(next(keys), (4 * hidden_size,), jnp.float32) * k,
            "b_hh": jax.random.normal(next(keys), (4 * hidden_size,), jnp.float32) * k,
        })
    params["lstm"] = lstm

    params["end_fc_w"] = jax.random.normal(next(keys), (output_size, hidden_size), jnp.float32) * k
    params["end_fc_b"] = jnp.zeros((output_size,), jnp.float32)
    return params


# ---------------------------------------------------------------------------

if __name__ == "__main__":
    input_size, output_size, hidden_size, num_layers = 16, 8, 32, 2

    key = jax.random.PRNGKey(0)
    pkey, xkey = jax.random.split(key)
    params = make_params(pkey, input_size, output_size, hidden_size, num_layers)

    # 4 images -> encoder -> sequence of length 4 (seq_sizes=None path: batch dim = 1).
    x = jax.random.normal(xkey, (4, 3, 16, 16), jnp.float32)

    out = model_forward(params, x, seq_sizes=None)
    out = jax.block_until_ready(out)
    assert out.shape == (1, 4, output_size), out.shape
    assert bool(jnp.all(jnp.isfinite(out)))

    # seq_sizes path: split the 4 embeddings into sequences of length 3 and 1.
    out2 = model_forward(params, x, seq_sizes=[3, 1])
    out2 = jax.block_until_ready(out2)
    assert out2.shape == (2, 3, output_size), out2.shape
    assert bool(jnp.all(jnp.isfinite(out2)))

    print("KERNEL_OK")
</pallas_src>

<mosaic_0001>
module attributes {stable_mosaic.version = 11 : i64} {
  func.func @_mm_epilogue_kernel(%arg0: i32, %arg1: i32, %arg2: i32, %arg3: memref<128x256xbf16, #tpu.memory_space<vmem>>, %arg4: memref<256x128xbf16, #tpu.memory_space<vmem>>, %arg5: memref<2x128xf32, #tpu.memory_space<vmem>>, %arg6: memref<128x128xbf16, #tpu.memory_space<vmem>>, %arg7: memref<128x128xf32, #tpu.memory_space<vmem>>) attributes {dimension_semantics = [#tpu.dimension_semantics<parallel>, #tpu.dimension_semantics<parallel>, #tpu.dimension_semantics<arbitrary>], iteration_bounds = array<i64: 2, 1, 1>, scalar_prefetch = 0 : i64, scratch_operands = 1 : i64, tpu.core_type = #tpu.core_type<tc>, window_params = [{transform_indices = @transform_0, window_bounds = array<i64: 128, 256>}, {transform_indices = @transform_1, window_bounds = array<i64: 256, 128>}, {transform_indices = @transform_2, window_bounds = array<i64: 2, 128>}, {transform_indices = @transform_3, window_bounds = array<i64: 128, 128>}]} {
    %c0_i32 = arith.constant 0 : i32
    %0 = arith.cmpi eq, %arg2, %c0_i32 : i32
    %1 = arith.extui %0 : i1 to i32
    %c0_i32_0 = arith.constant 0 : i32
    %2 = arith.cmpi ne, %1, %c0_i32_0 : i32
    scf.if %2 {
      %cst_10 = arith.constant 0.000000e+00 : f32
      %12 = vector.broadcast %cst_10 : f32 to vector<128x128xf32>
      %c0_11 = arith.constant 0 : index
      %c0_12 = arith.constant 0 : index
      %13 = vector.load %arg7[%c0_11, %c0_12] : memref<128x128xf32, #tpu.memory_space<vmem>>, vector<128x128xf32>
      tpu.vector_store %arg7[%c0_11, %c0_12], %12 {strides = array<i32>} : memref<128x128xf32, #tpu.memory_space<vmem>>, vector<128x128xf32>,
    } else {
    }
    %c0 = arith.constant 0 : index
    %c0_1 = arith.constant 0 : index
    %3 = vector.load %arg7[%c0, %c0_1] : memref<128x128xf32, #tpu.memory_space<vmem>>, vector<128x128xf32>
    %c0_2 = arith.constant 0 : index
    %c0_3 = arith.constant 0 : index
    %4 = vector.load %arg3[%c0_2, %c0_3] : memref<128x256xbf16, #tpu.memory_space<vmem>>, vector<128x256xbf16>
    %c0_4 = arith.constant 0 : index
    %c0_5 = arith.constant 0 : index
    %5 = vector.load %arg4[%c0_4, %c0_5] : memref<256x128xbf16, #tpu.memory_space<vmem>>, vector<256x128xbf16>
    %cst = arith.constant dense<0.000000e+00> : vector<128x128xf32>
    %6 = tpu.matmul %4, %5, %cst {dimension_numbers = #tpu.dot_dimension_numbers<[1], [0], [0], [1], [0, 0, 1, 1], [], []>} : vector<128x256xbf16>, vector<256x128xbf16>, vector<128x128xf32> -> vector<128x128xf32>
    %7 = arith.addf %3, %6 : vector<128x128xf32>
    %c0_6 = arith.constant 0 : index
    %c0_7 = arith.constant 0 : index
    %8 = vector.load %arg7[%c0_6, %c0_7] : memref<128x128xf32, #tpu.memory_space<vmem>>, vector<128x128xf32>
    tpu.vector_store %arg7[%c0_6, %c0_7], %7 {strides = array<i32>} : memref<128x128xf32, #tpu.memory_space<vmem>>, vector<128x128xf32>,
    %c0_i32_8 = arith.constant 0 : i32
    %9 = arith.cmpi eq, %arg2, %c0_i32_8 : i32
    %10 = arith.extui %9 : i1 to i32
    %c0_i32_9 = arith.constant 0 : i32
    %11 = arith.cmpi ne, %10, %c0_i32_9 : i32
    scf.if %11 {
      %c0_10 = arith.constant 0 : index
      %c0_11 = arith.constant 0 : index
      %12 = vector.load %arg7[%c0_10, %c0_11] : memref<128x128xf32, #tpu.memory_space<vmem>>, vector<128x128xf32>
      %c0_12 = arith.constant 0 : index
      %c0_13 = arith.constant 0 : index
      %13 = vector.load %arg5[%c0_12, %c0_13] : memref<2x128xf32, #tpu.memory_space<vmem>>, vector<1x128xf32>
      %14 = vector.broadcast %13 : vector<1x128xf32> to vector<128x128xf32>
      %15 = arith.mulf %12, %14 : vector<128x128xf32>
      %c1 = arith.constant 1 : index
      %c0_14 = arith.constant 0 : index
      %16 = vector.load %arg5[%c1, %c0_14] : memref<2x128xf32, #tpu.memory_space<vmem>>, vector<1x128xf32>
      %17 = vector.broadcast %16 : vector<1x128xf32> to vector<128x128xf32>
      %18 = arith.addf %15, %17 : vector<128x128xf32>
      %cst_15 = arith.constant 0.000000e+00 : f32
      %19 = vector.broadcast %cst_15 : f32 to vector<128x128xf32>
      %20 = arith.maximumf %18, %19 : vector<128x128xf32>
      %21 = arith.truncf %20 : vector<128x128xf32> to vector<128x128xbf16>
      %c0_16 = arith.constant 0 : index
      %c0_17 = arith.constant 0 : index
      %22 = vector.load %arg6[%c0_16, %c0_17] : memref<128x128xbf16, #tpu.memory_space<vmem>>, vector<128x128xbf16>
      tpu.vector_store %arg6[%c0_16, %c0_17], %21 {strides = array<i32>} : memref<128x128xbf16, #tpu.memory_space<vmem>>, vector<128x128xbf16>,
    } else {
    }
    return
  }
  func.func @transform_0(%arg0: i32, %arg1: i32, %arg2: i32) -> (i32, i32) {
    %c0_i32 = arith.constant 0 : i32
    return %arg0, %arg2 : i32, i32
  }
  func.func @transform_1(%arg0: i32, %arg1: i32, %arg2: i32) -> (i32, i32) {
    %c0_i32 = arith.constant 0 : i32
    return %arg2, %arg1 : i32, i32
  }
  func.func @transform_2(%arg0: i32, %arg1: i32, %arg2: i32) -> (i32, i32) {
    %c0_i32 = arith.constant 0 : i32
    %c0_i32_0 = arith.constant 0 : i32
    return %c0_i32, %arg1 : i32, i32
  }
  func.func @transform_3(%arg0: i32, %arg1: i32, %arg2: i32) -> (i32, i32) {
    %c0_i32 = arith.constant 0 : i32
    return %arg0, %arg1 : i32, i32
  }
}

</mosaic_0001>

<llo_original>
// kernel: tpu_custom_call.1
$region0: #{tpu_custom_call.1}
  #allocation0 [shape = 'u32[]', space=smem, size = 0x4, offset = 0x4, fixed_abs, tag = 'smem constant byte address 0x4 - core index']
  #allocation1 [shape = 'u32[144,128]{1,0:T(1,128)}', space=vmem, size = 0x12000, scoped, tag = 'internal scratch']
  #allocation2 [shape = 'f32[128,128]{1,0:T(8,128)}', space=vmem, size = 0x10000, scoped, tag = 'scratch operand']
  %s0 = inlined_call_operand.hbm [shape: bf16[256,256], index: 0, kind: input, shape index: {}]
  %s1 = inlined_call_operand.hbm [shape: bf16[256,128], index: 1, kind: input, shape index: {}]
  %s2 = inlined_call_operand.vmem [shape: f32[2,128], index: 2, kind: input, shape index: {}]
  %s3 = inlined_call_operand.hbm [shape: bf16[256,128], index: 3, kind: output, shape index: {}]
  %s4 = sld [smem:[#allocation0]]
  $region61: #{tpu_custom_call.1} parent=0
    _
  %s6 = ssub.s32 1, %s4
  %s7 = scalar_select 0, %s6, %s4
  $region1: #{tpu_custom_call.1} parent=0
    #allocation3 [shape = 'u8[131072]{0}', space=vmem, size = 0x20000, scoped, tag = 'input window, operand 0']
    #allocation4 [shape = 's32[2]{0}', space=sflag, size = 0x8, scoped, tag = 'scoped memory for tpu_custom_call.1']
    #allocation5 [shape = 's32[2]{0}', space=sflag, size = 0x8, scoped, tag = 'scoped memory for tpu_custom_call.1']
    #allocation6 [shape = 'u8[65536]{0}', space=vmem, size = 0x10000, scoped, tag = 'input window, operand 1, single buffered']
    #allocation7 [shape = 's32[1]{0}', space=sflag, size = 0x4, scoped, tag = 'scoped memory for tpu_custom_call.1']
    #allocation8 [shape = 'u8[65536]{0}', space=vmem, size = 0x10000, scoped, tag = 'output window, operand 0']
    %8 = vsyncpa [#allocation4], 0
    %s9 = scalar_lea.sflag [#allocation4], 1
    %10 = vsyncpa %s9, 0
    %11 = vsyncpa [#allocation7], 0
    %12 = vsyncpa [#allocation5], 0
    %s13 = scalar_lea.sflag [#allocation5], 1
    %14 = vsyncpa %s13, 0
    loop: start=0, step=1, limit=4
    $region2: #{tpu_custom_call.1} parent=1 // loop_pre_header
      _
    $region3: #{tpu_custom_call.1} parent=1 // loop_header
      %s16 = sphi 0, %s20
      %p17 = scmp.ge.s32.totalorder %s16, 4
      %s23 = sphi 0, %s42
      %s24 = sphi 0, %s38
      %s25 = sphi 0, %s34
      %s26 = sphi 0, %s23
      %s27 = sphi 0, %s24
      %s28 = sphi 0, %s25
      %s29 = sphi 0, %s26
      %s30 = sphi 0, %s27
      %s31 = sphi 0, %s28
      %s47 = sphi 0, %s49
      %s50 = sphi 0, %s47
      %s51 = sphi 0, %s50
      %s67 = sphi 0, %s51
      %s75 = sphi 0, %s77
      %s78 = sphi 0, %s75
      %s79 = sphi 0, %s78
      %s95 = sphi 0, %s79
      %s101 = sphi 0, %s103
      %s104 = sphi 0, %s101
      %s105 = sphi 0, %s104
      %s121 = sphi 0, %s105
      %s129 = sphi 0, %s131
      %s132 = sphi 0, %s129
      %s133 = sphi 0, %s132
      %s149 = sphi 0, %s133
    $region4: #{tpu_custom_call.1} parent=1 // loop_header_branch
      %19 = sbr.rel (%p17) target = $region8
    $region5: #{tpu_custom_call.1} parent=1 // loop_body
      %s21 = ssub.s32 %s16, 1
      %s22 = ssub.s32 %s16, 2
      %s32 = sadd.s32 1, %s25
      %p33 = scmp.ge.s32.totalorder %s32, 1
      %s34 = scalar_select %p33, 0, %s32
      %s35 = sadd.s32 1, %s24
      %s36 = scalar_select %p33, %s35, %s24
      %p37 = scmp.ge.s32.totalorder %s36, 1
      %s38 = scalar_select %p37, 0, %s36
      %s39 = sadd.s32 1, %s23
      %s40 = scalar_select %p37, %s39, %s23
      %p41 = scmp.ge.s32.totalorder %s40, 2
      %s42 = scalar_select %p41, 0, %s40
      %s43 = ssub.s32 %s23, %s42
      %s44 = ssub.s32 %s25, %s34
      %s45 = sor.u32 %s43, %s44
      %p46 = scmp.eq.s32.totalorder %s45, 0
      %s48 = sadd.s32 %s47, 1
      %s49 = scalar_select %p46, %s47, %s48
      %p52 = pneg %p46
      %p53 = scmp.eq.s32.totalorder %s16, 1
      %p54 = por %p52, %p53
      %p55 = scmp.ne.s32.totalorder %s47, %s50
      %p56 = scmp.eq.s32.totalorder %s16, 0
      %p57 = por %p55, %p56
      %p58 = scmp.ne.s32.totalorder %s47, %s50
      %p59 = scmp.eq.s32.totalorder %s21, 1
      %p60 = por %p58, %p59
      %p61 = scmp.ne.s32.totalorder %s50, %s51
      %p62 = scmp.eq.s32.totalorder %s21, 0
      %p63 = por %p61, %p62
      %p64 = scmp.ne.s32.totalorder %s50, %s51
      %p65 = scmp.eq.s32.totalorder %s22, 1
      %p66 = por %p64, %p65
      %p68 = scmp.ne.s32.totalorder %s51, %s67
      %p69 = scmp.eq.s32.totalorder %s22, 0
      %p70 = por %p68, %p69
      %s71 = ssub.s32 %s25, %s34
      %s72 = ssub.s32 %s24, %s38
      %s73 = sor.u32 %s71, %s72
      %p74 = scmp.eq.s32.totalorder %s73, 0
      %s76 = sadd.s32 %s75, 1
      %s77 = scalar_select %p74, %s75, %s76
      %p80 = pneg %p74
      %p81 = scmp.eq.s32.totalorder %s16, 1
      %p82 = por %p80, %p81
      %p83 = scmp.ne.s32.totalorder %s75, %s78
      %p84 = scmp.eq.s32.totalorder %s16, 0
      %p85 = por %p83, %p84
      %p86 = scmp.ne.s32.totalorder %s75, %s78
      %p87 = scmp.eq.s32.totalorder %s21, 1
      %p88 = por %p86, %p87
      %p89 = scmp.ne.s32.totalorder %s78, %s79
      %p90 = scmp.eq.s32.totalorder %s21, 0
      %p91 = por %p89, %p90
      %p92 = scmp.ne.s32.totalorder %s78, %s79
      %p93 = scmp.eq.s32.totalorder %s22, 1
      %p94 = por %p92, %p93
      %p96 = scmp.ne.s32.totalorder %s79, %s95
      %p97 = scmp.eq.s32.totalorder %s22, 0
      %p98 = por %p96, %p97
      %s99 = ssub.s32 %s24, %s38
      %p100 = scmp.eq.s32.totalorder %s99, 0
      %s102 = sadd.s32 %s101, 1
      %s103 = scalar_select %p100, %s101, %s102
      %p106 = pneg %p100
      %p107 = scmp.eq.s32.totalorder %s16, 1
      %p108 = por %p106, %p107
      %p109 = scmp.ne.s32.totalorder %s101, %s104
      %p110 = scmp.eq.s32.totalorder %s16, 0
      %p111 = por %p109, %p110
      %p112 = scmp.ne.s32.totalorder %s101, %s104
      %p113 = scmp.eq.s32.totalorder %s21, 1
      %p114 = por %p112, %p113
      %p115 = scmp.ne.s32.totalorder %s104, %s105
      %p116 = scmp.eq.s32.totalorder %s21, 0
      %p117 = por %p115, %p116
      %p118 = scmp.ne.s32.totalorder %s104, %s105
      %p119 = scmp.eq.s32.totalorder %s22, 1
      %p120 = por %p118, %p119
      %p122 = scmp.ne.s32.totalorder %s105, %s121
      %p123 = scmp.eq.s32.totalorder %s22, 0
      %p124 = por %p122, %p123
      %s125 = ssub.s32 %s23, %s42
      %s126 = ssub.s32 %s24, %s38
      %s127 = sor.u32 %s125, %s126
      %p128 = scmp.eq.s32.totalorder %s127, 0
      %s130 = sadd.s32 %s129, 1
      %s131 = scalar_select %p128, %s129, %s130
      %p134 = pneg %p128
      %p135 = scmp.eq.s32.totalorder %s16, 1
      %p136 = por %p134, %p135
      %p137 = scmp.ne.s32.totalorder %s129, %s132
      %p138 = scmp.eq.s32.totalorder %s16, 0
      %p139 = por %p137, %p138
      %p140 = scmp.ne.s32.totalorder %s129, %s132
      %p141 = scmp.eq.s32.totalorder %s21, 1
      %p142 = por %p140, %p141
      %p143 = scmp.ne.s32.totalorder %s132, %s133
      %p144 = scmp.eq.s32.totalorder %s21, 0
      %p145 = por %p143, %p144
      %p146 = scmp.ne.s32.totalorder %s132, %s133
      %p147 = scmp.eq.s32.totalorder %s22, 1
      %p148 = por %p146, %p147
      %p150 = scmp.ne.s32.totalorder %s133, %s149
      %p151 = scmp.eq.s32.totalorder %s22, 0
      %p152 = por %p150, %p151
      %p153 = scmp.le.s32.totalorder 1, %s16
      %p154 = scmp.lt.s32.totalorder %s16, 3
      %p155 = pnand %p153, %p154
      %p156 = pneg %p155
      // Predicated region
      $region9: #{tpu_custom_call.1} parent=5 // pred_check
        _
      $region10: #{tpu_custom_call.1} parent=5 // pred_check_branch
        %158 = sbr.rel (%p155) target = $region12
      $region11: #{tpu_custom_call.1} parent=5 // pred_region
        %s159 = ssub.s32 %s16, 1
        // Predicated region
        $region13: #{tpu_custom_call.1} parent=11 // pred_check
          %p160 = pneg %p91
        $region14: #{tpu_custom_call.1} parent=11 // pred_check_branch
          %162 = sbr.rel (%p160) target = $region16
        $region15: #{tpu_custom_call.1} parent=11 // pred_region
          %s163 = smul.u32 32, %s28
          %s165 = ssub.s32 2048, 2048
          %166 = vsyncadd [#allocation7], %s165
          %s167 = sadd.s32 %s27, %s163
          %s168 = smul.addr %s167, 64
          %s169 = scalar_lea.hbm %s1, %s168
          %s170 = sshll.u32 [#allocation6], 4
          %s171 = int_to_ptr.vmem [resolvable:$true] %s170
          %176 = dma.hbm_to_vmem [thread:$0]  %s169, 2048, %s171, [#allocation7], 64, 64, 4
        $region16: #{tpu_custom_call.1} parent=11 // pred_fallthru
          _
        // Predicated region
        $region17: #{tpu_custom_call.1} parent=11 // pred_check
          %p177 = pneg %p117
        $region18: #{tpu_custom_call.1} parent=11 // pred_check_branch
          %179 = sbr.rel (%p177) target = $region20
        $region19: #{tpu_custom_call.1} parent=11 // pred_region
          %p180 = scmp.lt.s32.totalorder %s27, 0
          %s181 = scalar_select %p180, %s27, 0
          %s182 = smul.addr %s181, 2
          %s183 = scalar_lea.vmem %s2, %s182
        $region20: #{tpu_custom_call.1} parent=11 // pred_fallthru
          _
      $region12: #{tpu_custom_call.1} parent=5 // pred_fallthru
        _
      %p184 = scmp.lt.s32.totalorder %s16, 2
      // Predicated region
      $region21: #{tpu_custom_call.1} parent=5 // pred_check
        %p185 = pneg %p184
      $region22: #{tpu_custom_call.1} parent=5 // pred_check_branch
        %187 = sbr.rel (%p185) target = $region24
      $region23: #{tpu_custom_call.1} parent=5 // pred_region
        // Predicated region
        $region25: #{tpu_custom_call.1} parent=23 // pred_check
          %p188 = pneg %p57
        $region26: #{tpu_custom_call.1} parent=23 // pred_check_branch
          %190 = sbr.rel (%p188) target = $region28
        $region27: #{tpu_custom_call.1} parent=23 // pred_region
          %s191 = sand.u32 %s47, 1
          %s192 = scalar_lea.sflag [#allocation4], %s191
          %s193 = sand.u32 %s47, 1
          %s194 = smul.addr %s193, 128
          %s195 = scalar_lea.vmem [#allocation3], %s194
          %s196 = smul.u32 16, %s23
          %s197 = smul.u32 2, %s25
          %s199 = ssub.s32 2048, 2048
          %200 = vsyncadd %s192, %s199
          %s201 = smul.addr %s196, 2
          %s202 = sadd.s32 %s197, %s201
          %s203 = smul.addr %s202, 64
          %s204 = scalar_lea.hbm %s0, %s203
          %s205 = sshll.u32 %s195, 4
          %s206 = int_to_ptr.vmem [resolvable:$true] %s205
          %211 = dma.hbm_to_vmem [thread:$0]  %s204, 2048, %s206, %s192, 128, 128, 8
        $region28: #{tpu_custom_call.1} parent=23 // pred_fallthru
          _
      $region24: #{tpu_custom_call.1} parent=5 // pred_fallthru
        _
      %p212 = scmp.le.s32.totalorder 1, %s16
      %p213 = scmp.lt.s32.totalorder %s16, 3
      %p214 = pnand %p212, %p213
      %p215 = pneg %p214
      // Predicated region
      $region29: #{tpu_custom_call.1} parent=5 // pred_check
        _
      $region30: #{tpu_custom_call.1} parent=5 // pred_check_branch
        %217 = sbr.rel (%p214) target = $region32
      $region31: #{tpu_custom_call.1} parent=5 // pred_region
        %s218 = ssub.s32 %s16, 1
        %s219 = sand.u32 %s50, 1
        %s220 = scalar_lea.sflag [#allocation4], %s219
        %s221 = sand.u32 %s50, 1
        %s222 = smul.addr %s221, 128
        %s223 = scalar_lea.vmem [#allocation3], %s222
        // Predicated region
        $region33: #{tpu_custom_call.1} parent=31 // pred_check
          %p224 = pneg %p63
        $region34: #{tpu_custom_call.1} parent=31 // pred_check_branch
          %226 = sbr.rel (%p224) target = $region36
        $region35: #{tpu_custom_call.1} parent=31 // pred_region
          %227 = dma.done %s220, 2048
        $region36: #{tpu_custom_call.1} parent=31 // pred_fallthru
          _
        // Predicated region
        $region37: #{tpu_custom_call.1} parent=31 // pred_check
          %p228 = pneg %p91
        $region38: #{tpu_custom_call.1} parent=31 // pred_check_branch
          %230 = sbr.rel (%p228) target = $region40
        $region39: #{tpu_custom_call.1} parent=31 // pred_region
          %231 = dma.done [#allocation7], 2048
        $region40: #{tpu_custom_call.1} parent=31 // pred_fallthru
          _
        %s232 = sand.u32 %s50, 1
        %s233 = scalar_lea.sflag [#allocation4], %s232
        %s234 = sand.u32 %s50, 1
        %s235 = smul.addr %s234, 128
        %s236 = scalar_lea.vmem [#allocation3], %s235
        %p237 = pneg %p63
        %p238 = pneg %p60
        %p239 = pneg %p91
        %p240 = pneg %p88
        %p241 = scmp.lt.s32.totalorder %s27, 0
        %s242 = scalar_select %p241, %s27, 0
        %s243 = smul.addr %s242, 2
        %s244 = scalar_lea.vmem %s2, %s243
        %p245 = pneg %p117
        %p246 = pneg %p114
        %p247 = pneg %p145
        %p248 = pneg %p142
        %s249 = sand.u32 %s132, 1
        %s250 = scalar_lea.sflag [#allocation5], %s249
        %s251 = sand.u32 %s132, 1
        %s252 = smul.addr %s251, 64
        %s253 = scalar_lea.vmem [#allocation8], %s252
        %s254 = smul.u32 16, %s26
        %s255 = smul.u32 2, %s28
        %s256 = smul.u32 32, %s28
        %p257 = scmp.lt.s32.totalorder %s27, 0
        %s258 = scalar_select %p257, %s27, 0
        %s259 = smul.addr %s258, 2
        %s260 = scalar_lea.vmem %s2, %s259
        %s261 = smul.u32 16, %s26
        %p263 = scmp.eq.s32.totalorder %s28, 0
        // Predicated region
        $region41: #{tpu_custom_call.1} parent=31 // pred_check
          %p264 = pneg %p263
        $region42: #{tpu_custom_call.1} parent=31 // pred_check_branch
          %266 = sbr.rel (%p264) target = $region44
        $region43: #{tpu_custom_call.1} parent=31 // pred_region
          %267 = vst [vmem:[#allocation2] sm:$0xff] 0.0
          %268 = vst [vmem:[#allocation2 + $0x8] sm:$0xff] 0.0
          %269 = vst [vmem:[#allocation2 + $0x10] sm:$0xff] 0.0
          %270 = vst [vmem:[#allocation2 + $0x18] sm:$0xff] 0.0
          %271 = vst [vmem:[#allocation2 + $0x20] sm:$0xff] 0.0
          %272 = vst [vmem:[#allocation2 + $0x28] sm:$0xff] 0.0
          %273 = vst [vmem:[#allocation2 + $0x30] sm:$0xff] 0.0
          %274 = vst [vmem:[#allocation2 + $0x38] sm:$0xff] 0.0
          %275 = vst [vmem:[#allocation2 + $0x40] sm:$0xff] 0.0
          %276 = vst [vmem:[#allocation2 + $0x48] sm:$0xff] 0.0
          %277 = vst [vmem:[#allocation2 + $0x50] sm:$0xff] 0.0
          %278 = vst [vmem:[#allocation2 + $0x58] sm:$0xff] 0.0
          %279 = vst [vmem:[#allocation2 + $0x60] sm:$0xff] 0.0
          %280 = vst [vmem:[#allocation2 + $0x68] sm:$0xff] 0.0
          %281 = vst [vmem:[#allocation2 + $0x70] sm:$0xff] 0.0
          %282 = vst [vmem:[#allocation2 + $0x78] sm:$0xff] 0.0
        $region44: #{tpu_custom_call.1} parent=31 // pred_fallthru
          _
        %v283 = vld [vmem:[#allocation2] sm:$0xff]
        %v284 = vld [vmem:[#allocation2 + $0x8] sm:$0xff]
        %v285 = vld [vmem:[#allocation2 + $0x10] sm:$0xff]
        %v286 = vld [vmem:[#allocation2 + $0x18] sm:$0xff]
        %v287 = vld [vmem:[#allocation2 + $0x20] sm:$0xff]
        %v288 = vld [vmem:[#allocation2 + $0x28] sm:$0xff]
        %v289 = vld [vmem:[#allocation2 + $0x30] sm:$0xff]
        %v290 = vld [vmem:[#allocation2 + $0x38] sm:$0xff]
        %v291 = vld [vmem:[#allocation2 + $0x40] sm:$0xff]
        %v292 = vld [vmem:[#allocation2 + $0x48] sm:$0xff]
        %v293 = vld [vmem:[#allocation2 + $0x50] sm:$0xff]
        %v294 = vld [vmem:[#allocation2 + $0x58] sm:$0xff]
        %v295 = vld [vmem:[#allocation2 + $0x60] sm:$0xff]
        %v296 = vld [vmem:[#allocation2 + $0x68] sm:$0xff]
        %v297 = vld [vmem:[#allocation2 + $0x70] sm:$0xff]
        %v298 = vld [vmem:[#allocation2 + $0x78] sm:$0xff]
        %v299 = vld [vmem:[%s223] sm:$0xff]
        %v300 = vld [vmem:[%s223 + $0x8] sm:$0xff]
        %v301 = vld [vmem:[%s223 + $0x10] sm:$0xff]
        %v302 = vld [vmem:[%s223 + $0x18] sm:$0xff]
        %v303 = vld [vmem:[%s223 + $0x20] sm:$0xff]
        %v304 = vld [vmem:[%s223 + $0x28] sm:$0xff]
        %v305 = vld [vmem:[%s223 + $0x30] sm:$0xff]
        %v306 = vld [vmem:[%s223 + $0x38] sm:$0xff]
        %v307 = vld [vmem:[%s223 + $0x40] sm:$0xff]
        %v308 = vld [vmem:[%s223 + $0x48] sm:$0xff]
        %v309 = vld [vmem:[%s223 + $0x50] sm:$0xff]
        %v310 = vld [vmem:[%s223 + $0x58] sm:$0xff]
        %v311 = vld [vmem:[%s223 + $0x60] sm:$0xff]
        %v312 = vld [vmem:[%s223 + $0x68] sm:$0xff]
        %v313 = vld [vmem:[%s223 + $0x70] sm:$0xff]
        %v314 = vld [vmem:[%s223 + $0x78] sm:$0xff]
        %v315 = vld [vmem:[#allocation6] sm:$0xf]
        %v316 = vld [vmem:[#allocation6 + $0x4] sm:$0xf]
        %v317 = vld [vmem:[#allocation6 + $0x8] sm:$0xf]
        %v318 = vld [vmem:[#allocation6 + $0xc] sm:$0xf]
        %v319 = vld [vmem:[#allocation6 + $0x10] sm:$0xf]
        %v320 = vld [vmem:[#allocation6 + $0x14] sm:$0xf]
        %v321 = vld [vmem:[#allocation6 + $0x18] sm:$0xf]
        %v322 = vld [vmem:[#allocation6 + $0x1c] sm:$0xf]
        %v323 = vld [vmem:[#allocation6 + $0x20] sm:$0xf]
        %v324 = vld [vmem:[#allocation6 + $0x24] sm:$0xf]
        %v325 = vld [vmem:[#allocation6 + $0x28] sm:$0xf]
        %v326 = vld [vmem:[#allocation6 + $0x2c] sm:$0xf]
        %v327 = vld [vmem:[#allocation6 + $0x30] sm:$0xf]
        %v328 = vld [vmem:[#allocation6 + $0x34] sm:$0xf]
        %v329 = vld [vmem:[#allocation6 + $0x38] sm:$0xf]
        %v330 = vld [vmem:[#allocation6 + $0x3c] sm:$0xf]
        %v331 = vld [vmem:[#allocation6 + $0x40] sm:$0xf]
        %v332 = vld [vmem:[#allocation6 + $0x44] sm:$0xf]
        %v333 = vld [vmem:[#allocation6 + $0x48] sm:$0xf]
        %v334 = vld [vmem:[#allocation6 + $0x4c] sm:$0xf]
        %v335 = vld [vmem:[#allocation6 + $0x50] sm:$0xf]
        %v336 = vld [vmem:[#allocation6 + $0x54] sm:$0xf]
        %v337 = vld [vmem:[#allocation6 + $0x58] sm:$0xf]
        %v338 = vld [vmem:[#allocation6 + $0x5c] sm:$0xf]
        %v339 = vld [vmem:[#allocation6 + $0x60] sm:$0xf]
        %v340 = vld [vmem:[#allocation6 + $0x64] sm:$0xf]
        %v341 = vld [vmem:[#allocation6 + $0x68] sm:$0xf]
        %v342 = vld [vmem:[#allocation6 + $0x6c] sm:$0xf]
        %v343 = vld [vmem:[#allocation6 + $0x70] sm:$0xf]
        %v344 = vld [vmem:[#allocation6 + $0x74] sm:$0xf]
        %v345 = vld [vmem:[#allocation6 + $0x78] sm:$0xf]
        %v346 = vld [vmem:[#allocation6 + $0x7c] sm:$0xf]
        %v363 = vunpack.c.l.b16 %v299
        %v364 = vunpack.c.h.b16 %v299
        %v365 = vunpack.c.l.b16 %v300
        %v366 = vunpack.c.h.b16 %v300
        %v367 = vunpack.c.l.b16 %v301
        %v368 = vunpack.c.h.b16 %v301
        %v369 = vunpack.c.l.b16 %v302
        %v370 = vunpack.c.h.b16 %v302
        %v371 = vunpack.c.l.b16 %v303
        %v372 = vunpack.c.h.b16 %v303
        %v373 = vunpack.c.l.b16 %v304
        %v374 = vunpack.c.h.b16 %v304
        %v375 = vunpack.c.l.b16 %v305
        %v376 = vunpack.c.h.b16 %v305
        %v377 = vunpack.c.l.b16 %v306
        %v378 = vunpack.c.h.b16 %v306
        %v379 = vunpack.c.l.b16 %v307
        %v380 = vunpack.c.h.b16 %v307
        %v381 = vunpack.c.l.b16 %v308
        %v382 = vunpack.c.h.b16 %v308
        %v383 = vunpack.c.l.b16 %v309
        %v384 = vunpack.c.h.b16 %v309
        %v385 = vunpack.c.l.b16 %v310
        %v386 = vunpack.c.h.b16 %v310
        %v387 = vunpack.c.l.b16 %v311
        %v388 = vunpack.c.h.b16 %v311
        %v389 = vunpack.c.l.b16 %v312
        %v390 = vunpack.c.h.b16 %v312
        %v391 = vunpack.c.l.b16 %v313
        %v392 = vunpack.c.h.b16 %v313
        %v393 = vunpack.c.l.b16 %v314
        %v394 = vunpack.c.h.b16 %v314
        %v395 = vpack.c.b16 %v365, %v363
        %v396 = vpack.c.b16 %v366, %v364
        %v397 = vpack.c.b16 %v369, %v367
        %v398 = vpack.c.b16 %v370, %v368
        %v399 = vpack.c.b16 %v373, %v371
        %v400 = vpack.c.b16 %v374, %v372
        %v401 = vpack.c.b16 %v377, %v375
        %v402 = vpack.c.b16 %v378, %v376
        %v403 = vpack.c.b16 %v381, %v379
        %v404 = vpack.c.b16 %v382, %v380
        %v405 = vpack.c.b16 %v385, %v383
        %v406 = vpack.c.b16 %v386, %v384
        %v407 = vpack.c.b16 %v389, %v387
        %v408 = vpack.c.b16 %v390, %v388
        %v409 = vpack.c.b16 %v393, %v391
        %v410 = vpack.c.b16 %v394, %v392
        %v459 = vunpack.c.l.b16 %v315
        %v460 = vunpack.c.l.b16 %v316
        %v461 = vunpack.c.l.b16 %v317
        %v462 = vunpack.c.l.b16 %v318
        %v463 = vunpack.c.l.b16 %v319
        %v464 = vunpack.c.l.b16 %v320
        %v465 = vunpack.c.l.b16 %v321
        %v466 = vunpack.c.l.b16 %v322
        %v467 = vunpack.c.l.b16 %v323
        %v468 = vunpack.c.l.b16 %v324
        %v469 = vunpack.c.l.b16 %v325
        %v470 = vunpack.c.l.b16 %v326
        %v471 = vunpack.c.l.b16 %v327
        %v472 = vunpack.c.l.b16 %v328
        %v473 = vunpack.c.l.b16 %v329
        %v474 = vunpack.c.l.b16 %v330
        %v475 = vunpack.c.l.b16 %v331
        %v476 = vunpack.c.l.b16 %v332
        %v477 = vunpack.c.l.b16 %v333
        %v478 = vunpack.c.l.b16 %v334
        %v479 = vunpack.c.l.b16 %v335
        %v480 = vunpack.c.l.b16 %v336
        %v481 = vunpack.c.l.b16 %v337
        %v482 = vunpack.c.l.b16 %v338
        %v483 = vunpack.c.l.b16 %v339
        %v484 = vunpack.c.l.b16 %v340
        %v485 = vunpack.c.l.b16 %v341
        %v486 = vunpack.c.l.b16 %v342
        %v487 = vunpack.c.l.b16 %v343
        %v488 = vunpack.c.l.b16 %v344
        %v489 = vunpack.c.l.b16 %v345
        %v490 = vunpack.c.l.b16 %v346
        %v491 = vpack.c.b16 %v460, %v459
        %v492 = vpack.c.b16 %v462, %v461
        %v493 = vpack.c.b16 %v464, %v463
        %v494 = vpack.c.b16 %v466, %v465
        %v495 = vpack.c.b16 %v468, %v467
        %v496 = vpack.c.b16 %v470, %v469
        %v497 = vpack.c.b16 %v472, %v471
        %v498 = vpack.c.b16 %v474, %v473
        %v499 = vpack.c.b16 %v476, %v475
        %v500 = vpack.c.b16 %v478, %v477
        %v501 = vpack.c.b16 %v480, %v479
        %v502 = vpack.c.b16 %v482, %v481
        %v503 = vpack.c.b16 %v484, %v483
        %v504 = vpack.c.b16 %v486, %v485
        %v505 = vpack.c.b16 %v488, %v487
        %v506 = vpack.c.b16 %v490, %v489
        %523 = vmatprep.subr.bf16.mxu0 0
        %524 = vmatpush1.bf16.msra.mxu0 %v498
        %525 = vmatprep.subr.bf16.mxu0 0
        %526 = vmatpush1.bf16.msra.mxu0 %v497
        %527 = vmatprep.subr.bf16.mxu0 0
        %528 = vmatpush1.bf16.msra.mxu0 %v496
        %529 = vmatprep.subr.bf16.mxu0 0
        %530 = vmatpush1.bf16.msra.mxu0 %v495
        %531 = vmatprep.subr.bf16.mxu0 0
        %532 = vmatpush1.bf16.msra.mxu0 %v494
        %533 = vmatprep.subr.bf16.mxu0 0
        %534 = vmatpush1.bf16.msra.mxu0 %v493
        %535 = vmatprep.subr.bf16.mxu0 0
        %536 = vmatpush1.bf16.msra.mxu0 %v492
        %537 = vmatprep.subr.bf16.mxu0 0
        %538 = vmatpush1.bf16.msra.mxu0 %v491
        %539 = vmatprep.subr.bf16.mxu0 0
        %540 = vmatpush2.bf16.msra.mxu0 %v506
        %541 = vmatprep.subr.bf16.mxu0 0
        %542 = vmatpush2.bf16.msra.mxu0 %v505
        %543 = vmatprep.subr.bf16.mxu0 0
        %544 = vmatpush2.bf16.msra.mxu0 %v504
        %545 = vmatprep.subr.bf16.mxu0 0
        %546 = vmatpush2.bf16.msra.mxu0 %v503
        %547 = vmatprep.subr.bf16.mxu0 0
        %548 = vmatpush2.bf16.msra.mxu0 %v502
        %549 = vmatprep.subr.bf16.mxu0 0
        %550 = vmatpush2.bf16.msra.mxu0 %v501
        %551 = vmatprep.subr.bf16.mxu0 0
        %552 = vmatpush2.bf16.msra.mxu0 %v500
        %553 = vmatprep.subr.bf16.mxu0 0
        %554 = vmatpush2.bf16.msra.mxu0 %v499
        %555 = vmatprep.mubr.bf16.mxu0 %v396
        %556 = vmatmul.mubr.bf16.gmra.mxu0 %v395
        %v557 = vpop.f32.mrf.mxu0
        %v558 = vadd.f32 0.0, %v557
        %v559 = vpop.f32.mrf.mxu0
        %v560 = vpop.f32.mrf.mxu0
        %v561 = vadd.f32 0.0, %v560
        %v562 = vpop.f32.mrf.mxu0
        %563 = vmatprep.mubr.bf16.mxu0 %v398
        %564 = vmatmul.mubr.bf16.gmra.mxu0 %v397
        %v565 = vpop.f32.mrf.mxu0
        %v566 = vadd.f32 0.0, %v565
        %v567 = vpop.f32.mrf.mxu0
        %v568 = vpop.f32.mrf.mxu0
        %v569 = vadd.f32 0.0, %v568
        %v570 = vpop.f32.mrf.mxu0
        %571 = vmatprep.mubr.bf16.mxu0 %v400
        %572 = vmatmul.mubr.bf16.gmra.mxu0 %v399
        %v573 = vpop.f32.mrf.mxu0
        %v574 = vadd.f32 0.0, %v573
        %v575 = vpop.f32.mrf.mxu0
        %v576 = vpop.f32.mrf.mxu0
        %v577 = vadd.f32 0.0, %v576
        %v578 = vpop.f32.mrf.mxu0
        %579 = vmatprep.mubr.bf16.mxu0 %v402
        %580 = vmatmul.mubr.bf16.gmra.mxu0 %v401
        %v581 = vpop.f32.mrf.mxu0
        %v582 = vadd.f32 0.0, %v581
        %v583 = vpop.f32.mrf.mxu0
        %v584 = vpop.f32.mrf.mxu0
        %v585 = vadd.f32 0.0, %v584
        %v586 = vpop.f32.mrf.mxu0
        %587 = vmatprep.mubr.bf16.mxu0 %v404
        %588 = vmatmul.mubr.bf16.gmra.mxu0 %v403
        %v589 = vpop.f32.mrf.mxu0
        %v590 = vadd.f32 0.0, %v589
        %v591 = vpop.f32.mrf.mxu0
        %v592 = vpop.f32.mrf.mxu0
        %v593 = vadd.f32 0.0, %v592
        %v594 = vpop.f32.mrf.mxu0
        %595 = vmatprep.mubr.bf16.mxu0 %v406
        %596 = vmatmul.mubr.bf16.gmra.mxu0 %v405
        %v597 = vpop.f32.mrf.mxu0
        %v598 = vadd.f32 0.0, %v597
        %v599 = vpop.f32.mrf.mxu0
        %v600 = vpop.f32.mrf.mxu0
        %v601 = vadd.f32 0.0, %v600
        %v602 = vpop.f32.mrf.mxu0
        %603 = vmatprep.mubr.bf16.mxu0 %v408
        %604 = vmatmul.mubr.bf16.gmra.mxu0 %v407
        %v605 = vpop.f32.mrf.mxu0
        %v606 = vadd.f32 0.0, %v605
        %v607 = vpop.f32.mrf.mxu0
        %v608 = vpop.f32.mrf.mxu0
        %v609 = vadd.f32 0.0, %v608
        %v610 = vpop.f32.mrf.mxu0
        %611 = vmatprep.mubr.bf16.mxu0 %v410
        %612 = vmatmul.mubr.bf16.gmra.mxu0 %v409
        %v613 = vpop.f32.mrf.mxu0
        %v614 = vadd.f32 0.0, %v613
        %v615 = vpop.f32.mrf.mxu0
        %v616 = vpop.f32.mrf.mxu0
        %v617 = vadd.f32 0.0, %v616
        %v618 = vpop.f32.mrf.mxu0
        %619 = vdwg.mxu0
        %v620 = vadd.f32 %v283, %v558
        %v621 = vadd.f32 %v284, %v561
        %v622 = vadd.f32 %v285, %v566
        %v623 = vadd.f32 %v286, %v569
        %v624 = vadd.f32 %v287, %v574
        %v625 = vadd.f32 %v288, %v577
        %v626 = vadd.f32 %v289, %v582
        %v627 = vadd.f32 %v290, %v585
        %v628 = vadd.f32 %v291, %v590
        %v629 = vadd.f32 %v292, %v593
        %v630 = vadd.f32 %v293, %v598
        %v631 = vadd.f32 %v294, %v601
        %v632 = vadd.f32 %v295, %v606
        %v633 = vadd.f32 %v296, %v609
        %v634 = vadd.f32 %v297, %v614
        %v635 = vadd.f32 %v298, %v617
        %636 = vst [vmem:[#allocation2] sm:$0xff] %v620
        %637 = vst [vmem:[#allocation2 + $0x8] sm:$0xff] %v621
        %638 = vst [vmem:[#allocation2 + $0x10] sm:$0xff] %v622
        %639 = vst [vmem:[#allocation2 + $0x18] sm:$0xff] %v623
        %640 = vst [vmem:[#allocation2 + $0x20] sm:$0xff] %v624
        %641 = vst [vmem:[#allocation2 + $0x28] sm:$0xff] %v625
        %642 = vst [vmem:[#allocation2 + $0x30] sm:$0xff] %v626
        %643 = vst [vmem:[#allocation2 + $0x38] sm:$0xff] %v627
        %644 = vst [vmem:[#allocation2 + $0x40] sm:$0xff] %v628
        %645 = vst [vmem:[#allocation2 + $0x48] sm:$0xff] %v629
        %646 = vst [vmem:[#allocation2 + $0x50] sm:$0xff] %v630
        %647 = vst [vmem:[#allocation2 + $0x58] sm:$0xff] %v631
        %648 = vst [vmem:[#allocation2 + $0x60] sm:$0xff] %v632
        %649 = vst [vmem:[#allocation2 + $0x68] sm:$0xff] %v633
        %650 = vst [vmem:[#allocation2 + $0x70] sm:$0xff] %v634
        %651 = vst [vmem:[#allocation2 + $0x78] sm:$0xff] %v635
        // Predicated region
        $region45: #{tpu_custom_call.1} parent=31 // pred_check
          %p652 = pneg %p263
        $region46: #{tpu_custom_call.1} parent=31 // pred_check_branch
          %654 = sbr.rel (%p652) target = $region48
        $region47: #{tpu_custom_call.1} parent=31 // pred_region
          %v655 = vld [vmem:[#allocation2] sm:$0xff]
          %v656 = vld [vmem:[#allocation2 + $0x8] sm:$0xff]
          %v657 = vld [vmem:[#allocation2 + $0x10] sm:$0xff]
          %v658 = vld [vmem:[#allocation2 + $0x18] sm:$0xff]
          %v659 = vld [vmem:[#allocation2 + $0x20] sm:$0xff]
          %v660 = vld [vmem:[#allocation2 + $0x28] sm:$0xff]
          %v661 = vld [vmem:[#allocation2 + $0x30] sm:$0xff]
          %v662 = vld [vmem:[#allocation2 + $0x38] sm:$0xff]
          %v663 = vld [vmem:[#allocation2 + $0x40] sm:$0xff]
          %v664 = vld [vmem:[#allocation2 + $0x48] sm:$0xff]
          %v665 = vld [vmem:[#allocation2 + $0x50] sm:$0xff]
          %v666 = vld [vmem:[#allocation2 + $0x58] sm:$0xff]
          %v667 = vld [vmem:[#allocation2 + $0x60] sm:$0xff]
          %v668 = vld [vmem:[#allocation2 + $0x68] sm:$0xff]
          %v669 = vld [vmem:[#allocation2 + $0x70] sm:$0xff]
          %v670 = vld [vmem:[#allocation2 + $0x78] sm:$0xff]
          %v671 = vld [vmem:[%s260] sm:$0x1]
          %v672 = vlaneseq
          %v673 = vshrl.u32 %v672, 7
          %v674 = vsub.s32 0, %v673
          %v675 = vrot.slane %v671, %v674
          %v676 = vmul.f32 %v655, %v675
          %v677 = vmul.f32 %v656, %v675
          %v678 = vmul.f32 %v657, %v675
          %v679 = vmul.f32 %v658, %v675
          %v680 = vmul.f32 %v659, %v675
          %v681 = vmul.f32 %v660, %v675
          %v682 = vmul.f32 %v661, %v675
          %v683 = vmul.f32 %v662, %v675
          %v684 = vmul.f32 %v663, %v675
          %v685 = vmul.f32 %v664, %v675
          %v686 = vmul.f32 %v665, %v675
          %v687 = vmul.f32 %v666, %v675
          %v688 = vmul.f32 %v667, %v675
          %v689 = vmul.f32 %v668, %v675
          %v690 = vmul.f32 %v669, %v675
          %v691 = vmul.f32 %v670, %v675
          %v692 = vld [vmem:[%s260 + $0x1] sm:$0x1]
          %v693 = vlaneseq
          %v694 = vshrl.u32 %v693, 7
          %v695 = vsub.s32 0, %v694
          %v696 = vrot.slane %v692, %v695
          %v697 = vadd.f32 %v676, %v696
          %v698 = vadd.f32 %v677, %v696
          %v699 = vadd.f32 %v678, %v696
          %v700 = vadd.f32 %v679, %v696
          %v701 = vadd.f32 %v680, %v696
          %v702 = vadd.f32 %v681, %v696
          %v703 = vadd.f32 %v682, %v696
          %v704 = vadd.f32 %v683, %v696
          %v705 = vadd.f32 %v684, %v696
          %v706 = vadd.f32 %v685, %v696
          %v707 = vadd.f32 %v686, %v696
          %v708 = vadd.f32 %v687, %v696
          %v709 = vadd.f32 %v688, %v696
          %v710 = vadd.f32 %v689, %v696
          %v711 = vadd.f32 %v690, %v696
          %v712 = vadd.f32 %v691, %v696
          %v713 = vmax.f32 %v697, 0.0
          %v714 = vmax.f32 %v698, 0.0
          %v715 = vmax.f32 %v699, 0.0
          %v716 = vmax.f32 %v700, 0.0
          %v717 = vmax.f32 %v701, 0.0
          %v718 = vmax.f32 %v702, 0.0
          %v719 = vmax.f32 %v703, 0.0
          %v720 = vmax.f32 %v704, 0.0
          %v721 = vmax.f32 %v705, 0.0
          %v722 = vmax.f32 %v706, 0.0
          %v723 = vmax.f32 %v707, 0.0
          %v724 = vmax.f32 %v708, 0.0
          %v725 = vmax.f32 %v709, 0.0
          %v726 = vmax.f32 %v710, 0.0
          %v727 = vmax.f32 %v711, 0.0
          %v728 = vmax.f32 %v712, 0.0
          %v729 = vpack.c.bf16 %v714, %v713
          %v730 = vpack.c.bf16 %v716, %v715
          %v731 = vpack.c.bf16 %v718, %v717
          %v732 = vpack.c.bf16 %v720, %v719
          %v733 = vpack.c.bf16 %v722, %v721
          %v734 = vpack.c.bf16 %v724, %v723
          %v735 = vpack.c.bf16 %v726, %v725
          %v736 = vpack.c.bf16 %v728, %v727
          %v745 = vunpack.c.l.b16 %v729
          %v746 = vunpack.c.h.b16 %v729
          %v747 = vunpack.c.l.b16 %v730
          %v748 = vunpack.c.h.b16 %v730
          %v749 = vunpack.c.l.b16 %v731
          %v750 = vunpack.c.h.b16 %v731
          %v751 = vunpack.c.l.b16 %v732
          %v752 = vunpack.c.h.b16 %v732
          %v753 = vunpack.c.l.b16 %v733
          %v754 = vunpack.c.h.b16 %v733
          %v755 = vunpack.c.l.b16 %v734
          %v756 = vunpack.c.h.b16 %v734
          %v757 = vunpack.c.l.b16 %v735
          %v758 = vunpack.c.h.b16 %v735
          %v759 = vunpack.c.l.b16 %v736
          %v760 = vunpack.c.h.b16 %v736
          %v761 = vpack.c.b16 %v745, %v745
          %v762 = vpack.c.b16 %v746, %v746
          %v763 = vpack.c.b16 %v747, %v747
          %v764 = vpack.c.b16 %v748, %v748
          %v765 = vpack.c.b16 %v749, %v749
          %v766 = vpack.c.b16 %v750, %v750
          %v767 = vpack.c.b16 %v751, %v751
          %v768 = vpack.c.b16 %v752, %v752
          %v769 = vpack.c.b16 %v753, %v753
          %v770 = vpack.c.b16 %v754, %v754
          %v771 = vpack.c.b16 %v755, %v755
          %v772 = vpack.c.b16 %v756, %v756
          %v773 = vpack.c.b16 %v757, %v757
          %v774 = vpack.c.b16 %v758, %v758
          %v775 = vpack.c.b16 %v759, %v759
          %v776 = vpack.c.b16 %v760, %v760
          %793 = vst [vmem:[%s253] sm:$0xf] %v761
          %794 = vst [vmem:[%s253 + $0x4] sm:$0xf] %v762
          %795 = vst [vmem:[%s253 + $0x8] sm:$0xf] %v763
          %796 = vst [vmem:[%s253 + $0xc] sm:$0xf] %v764
          %797 = vst [vmem:[%s253 + $0x10] sm:$0xf] %v765
          %798 = vst [vmem:[%s253 + $0x14] sm:$0xf] %v766
          %799 = vst [vmem:[%s253 + $0x18] sm:$0xf] %v767
          %800 = vst [vmem:[%s253 + $0x1c] sm:$0xf] %v768
          %801 = vst [vmem:[%s253 + $0x20] sm:$0xf] %v769
          %802 = vst [vmem:[%s253 + $0x24] sm:$0xf] %v770
          %803 = vst [vmem:[%s253 + $0x28] sm:$0xf] %v771
          %804 = vst [vmem:[%s253 + $0x2c] sm:$0xf] %v772
          %805 = vst [vmem:[%s253 + $0x30] sm:$0xf] %v773
          %806 = vst [vmem:[%s253 + $0x34] sm:$0xf] %v774
          %807 = vst [vmem:[%s253 + $0x38] sm:$0xf] %v775
          %808 = vst [vmem:[%s253 + $0x3c] sm:$0xf] %v776
        $region48: #{tpu_custom_call.1} parent=31 // pred_fallthru
          _
        %s809 = sand.u32 %s132, 1
        %s810 = scalar_lea.sflag [#allocation5], %s809
        %s811 = sand.u32 %s132, 1
        %s812 = smul.addr %s811, 64
        %s813 = scalar_lea.vmem [#allocation8], %s812
        // Predicated region
        $region49: #{tpu_custom_call.1} parent=31 // pred_check
          %p814 = pneg %p142
        $region50: #{tpu_custom_call.1} parent=31 // pred_check_branch
          %816 = sbr.rel (%p814) target = $region52
        $region51: #{tpu_custom_call.1} parent=31 // pred_region
          %s817 = smul.u32 16, %s26
          %s819 = ssub.s32 1024, 1024
          %820 = vsyncadd %s810, %s819
          %s821 = sadd.s32 %s27, %s817
          %s822 = smul.addr %s821, 64
          %s823 = scalar_lea.hbm %s3, %s822
          %s824 = sshll.u32 %s813, 4
          %s825 = int_to_ptr.vmem [resolvable:$true] %s824
          %830 = dma.vmem_to_hbm [thread:$0]  %s825, 1024, %s823, %s810, 64, 64, 4
        $region52: #{tpu_custom_call.1} parent=31 // pred_fallthru
          _
      $region32: #{tpu_custom_call.1} parent=5 // pred_fallthru
        _
      %p831 = scmp.le.s32.totalorder 2, %s16
      // Predicated region
      $region53: #{tpu_custom_call.1} parent=5 // pred_check
        %p832 = pneg %p831
      $region54: #{tpu_custom_call.1} parent=5 // pred_check_branch
        %834 = sbr.rel (%p832) target = $region56
      $region55: #{tpu_custom_call.1} parent=5 // pred_region
        %s835 = ssub.s32 %s16, 2
        // Predicated region
        $region57: #{tpu_custom_call.1} parent=55 // pred_check
          %p836 = pneg %p148
        $region58: #{tpu_custom_call.1} parent=55 // pred_check_branch
          %838 = sbr.rel (%p836) target = $region60
        $region59: #{tpu_custom_call.1} parent=55 // pred_region
          %s839 = sand.u32 %s133, 1
          %s840 = scalar_lea.sflag [#allocation5], %s839
          %s841 = sand.u32 %s133, 1
          %s842 = smul.addr %s841, 64
          %s843 = scalar_lea.vmem [#allocation8], %s842
          %844 = dma.done %s840, 1024
        $region60: #{tpu_custom_call.1} parent=55 // pred_fallthru
          _
      $region56: #{tpu_custom_call.1} parent=5 // pred_fallthru
        _
    $region6: #{tpu_custom_call.1} parent=1 // loop_footer
      %s20 = sadd.s32 1, %s16
    $region7: #{tpu_custom_call.1} parent=1 // loop_footer_branch
      %15 = sbr.rel target = $region3
    $region8: #{tpu_custom_call.1} parent=1 // loop_exit
      _
    %845 = vsyncpa [#allocation4], 1
    %s846 = scalar_lea.sflag [#allocation4], 1
    %847 = vsyncpa %s846, 1
    %848 = vsyncpa [#allocation7], 1
    %849 = vsyncpa [#allocation5], 1
    %s850 = scalar_lea.sflag [#allocation5], 1
    %851 = vsyncpa %s850, 1

</llo_original>
